<compile_context>
chip_gen: v5e
topology: v5e:2x2
jax: 0.10.0
libtpu: 0.0.40
codegen_flags: <defaults>
</compile_context>

<pallas_src>
import jax
import jax.numpy as jnp
from jax.experimental import pallas as pl
from jax.experimental.pallas import tpu as pltpu

LANE = 128        # TPU lane width; every hidden / target dim is padded to this
BIAS_ROWS = 8     # sublane-aligned extra rows in the packed slab (row LANE holds the bias)


# ---------------------------------------------------------------------------
# Kernel: one batch tile through the whole layer chain (statically unrolled).
# ---------------------------------------------------------------------------
def mlp_kernel(x_ref, p_ref, o_ref):
    """x_ref: (TB, F)  f32 batch tile, F = true num_features (unpadded)
       p_ref: (L, LANE+BIAS_ROWS, LANE) f32 packed weight+bias slab (VMEM resident)
       o_ref: (TB, LANE) f32 zero-padded output tile (lane-dense)
    """
    num_layers = p_ref.shape[0]
    in_dim = x_ref.shape[1]            # layer-0 contraction width = true feature count
    h = x_ref[...]
    for l in range(num_layers):        # static Python loop -> fully unrolled, 5 matmuls
        w = p_ref[l, :in_dim, :]       # (in_dim, LANE) weight, zero-padded columns
        b = p_ref[l, LANE:LANE + 1, :] # (1, LANE) bias, zero-padded
        h = jnp.dot(h, w, preferred_element_type=jnp.float32) + b
        if l < num_layers - 1:
            h = jnp.maximum(h, 0.0)    # ReLU on hidden layers only
        in_dim = LANE                  # after layer 0, activations are lane-padded
    o_ref[...] = h.astype(o_ref.dtype)


# ---------------------------------------------------------------------------
# Host-side helpers.
# ---------------------------------------------------------------------------
def _round_up(v, m):
    return (v + m - 1) // m * m


def pack_params(params):
    """Pack per-layer (W(in,out), b(out,)) into one lane-dense, zero-padded f32 slab."""
    n = len(params)
    slab = jnp.zeros((n, LANE + BIAS_ROWS, LANE), jnp.float32)
    for l, (w, b) in enumerate(params):
        fi, fo = w.shape
        slab = slab.at[l, :fi, :fo].set(w.astype(jnp.float32))
        slab = slab.at[l, LANE, :fo].set(b.reshape(-1).astype(jnp.float32))
    return slab


def mlp_forward(x, params, *, block_batch=512):
    """params: list of (W(in,out), b(out,)) tuples. Returns (batch, num_targets) f32."""
    batch, num_features = x.shape
    num_targets = params[-1][0].shape[1]
    assert num_features <= LANE and num_targets <= LANE
    for w, _ in params:
        assert w.shape[0] <= LANE and w.shape[1] <= LANE

    slab = pack_params(params)
    n_layers = slab.shape[0]

    # batch tile: multiple of 8 sublanes, capped by block_batch; pad batch (only)
    # to a whole number of tiles. Padded rows are garbage-free zeros, sliced off.
    tb = _round_up(min(block_batch, _round_up(batch, 8)), 8)
    b_pad = _round_up(batch, tb)

    x32 = x.astype(jnp.float32)
    if b_pad != batch:
        x32 = jnp.pad(x32, ((0, b_pad - batch), (0, 0)))

    out = pl.pallas_call(
        mlp_kernel,
        out_shape=jax.ShapeDtypeStruct((b_pad, LANE), jnp.float32),
        grid=(b_pad // tb,),
        in_specs=[
            # batch tile marches along the grid; last dim == full array dim (legal)
            pl.BlockSpec((tb, num_features), lambda i: (i, 0)),
            # single packed parameter slab, constant index -> fetched once, resident
            pl.BlockSpec((n_layers, LANE + BIAS_ROWS, LANE), lambda i: (0, 0, 0)),
        ],
        out_specs=pl.BlockSpec((tb, LANE), lambda i: (i, 0)),
        compiler_params=pltpu.CompilerParams(dimension_semantics=("parallel",)),
    )(x32, slab)

    return out[:batch, :num_targets]


# ---------------------------------------------------------------------------
# Deterministic init matching NetArchitecture.initialize_weights_and_biases:
# Xavier-uniform weights, zero biases. Weights stored as (in, out) = W_pt.T.
# ---------------------------------------------------------------------------
def init_params(key, layers_units):
    params = []
    for i in range(len(layers_units) - 1):
        fan_in, fan_out = layers_units[i], layers_units[i + 1]
        key, wkey = jax.random.split(key)
        bound = jnp.sqrt(6.0 / (fan_in + fan_out))
        w = jax.random.uniform(wkey, (fan_in, fan_out), jnp.float32,
                               minval=-bound, maxval=bound)
        b = jnp.zeros((fan_out,), jnp.float32)
        params.append((w, b))
    return params


def reference_forward(x, params):
    h = x.astype(jnp.float32)
    n = len(params)
    for i, (w, b) in enumerate(params):
        h = h @ w + b
        if i < n - 1:
            h = jnp.maximum(h, 0.0)
    return h


if __name__ == "__main__":
    num_features = 8
    num_targets = 3
    batch = 64
    layers_units = [num_features, 20, 30, 20, 10, num_targets]

    key = jax.random.PRNGKey(0)
    key, xkey = jax.random.split(key)
    x = jax.random.normal(xkey, (batch, num_features), jnp.float32)
    params = init_params(key, layers_units)

    # small block_batch so the demo exercises several pipelined grid steps
    out = mlp_forward(x, params, block_batch=16)
    out = jax.block_until_ready(out)

    ref = reference_forward(x, params)
    assert out.shape == (batch, num_targets)
    assert jnp.allclose(out, ref, atol=1e-5, rtol=1e-5)

    print("KERNEL_OK")
</pallas_src>

<mosaic_0001>
module attributes {stable_mosaic.version = 11 : i64} {
  func.func @mlp_kernel(%arg0: i32, %arg1: memref<16x8xf32, #tpu.memory_space<vmem>>, %arg2: memref<5x136x128xf32, #tpu.memory_space<vmem>>, %arg3: memref<16x128xf32, #tpu.memory_space<vmem>>) attributes {dimension_semantics = [#tpu.dimension_semantics<parallel>], iteration_bounds = array<i64: 4>, scalar_prefetch = 0 : i64, scratch_operands = 0 : i64, tpu.core_type = #tpu.core_type<tc>, window_params = [{transform_indices = @transform_0, window_bounds = array<i64: 16, 8>}, {pipeline_mode = #tpu.pipeline_mode<synchronous>, transform_indices = @transform_1, window_bounds = array<i64: 5, 136, 128>}, {transform_indices = @transform_2, window_bounds = array<i64: 16, 128>}]} {
    %c0 = arith.constant 0 : index
    %c0_0 = arith.constant 0 : index
    %0 = vector.load %arg1[%c0, %c0_0] : memref<16x8xf32, #tpu.memory_space<vmem>>, vector<16x8xf32>
    %c0_1 = arith.constant 0 : index
    %c0_2 = arith.constant 0 : index
    %c0_3 = arith.constant 0 : index
    %1 = vector.load %arg2[%c0_1, %c0_2, %c0_3] : memref<5x136x128xf32, #tpu.memory_space<vmem>>, vector<1x8x128xf32>
    %2 = vector.shape_cast %1 : vector<1x8x128xf32> to vector<8x128xf32>
    %c0_4 = arith.constant 0 : index
    %c128 = arith.constant 128 : index
    %c0_5 = arith.constant 0 : index
    %3 = vector.load %arg2[%c0_4, %c128, %c0_5] : memref<5x136x128xf32, #tpu.memory_space<vmem>>, vector<1x1x128xf32>
    %4 = vector.shape_cast %3 : vector<1x1x128xf32> to vector<1x128xf32>
    %cst = arith.constant dense<0.000000e+00> : vector<16x128xf32>
    %5 = tpu.matmul %0, %2, %cst {dimension_numbers = #tpu.dot_dimension_numbers<[1], [0], [0], [1], [0, 0, 1, 1], [], []>} : vector<16x8xf32>, vector<8x128xf32>, vector<16x128xf32> -> vector<16x128xf32>
    %6 = vector.broadcast %4 : vector<1x128xf32> to vector<16x128xf32>
    %7 = arith.addf %5, %6 : vector<16x128xf32>
    %cst_6 = arith.constant 0.000000e+00 : f32
    %8 = vector.broadcast %cst_6 : f32 to vector<16x128xf32>
    %9 = arith.maximumf %7, %8 : vector<16x128xf32>
    %c1 = arith.constant 1 : index
    %c0_7 = arith.constant 0 : index
    %c0_8 = arith.constant 0 : index
    %10 = vector.load %arg2[%c1, %c0_7, %c0_8] : memref<5x136x128xf32, #tpu.memory_space<vmem>>, vector<1x128x128xf32>
    %11 = vector.shape_cast %10 : vector<1x128x128xf32> to vector<128x128xf32>
    %c1_9 = arith.constant 1 : index
    %c128_10 = arith.constant 128 : index
    %c0_11 = arith.constant 0 : index
    %12 = vector.load %arg2[%c1_9, %c128_10, %c0_11] : memref<5x136x128xf32, #tpu.memory_space<vmem>>, vector<1x1x128xf32>
    %13 = vector.shape_cast %12 : vector<1x1x128xf32> to vector<1x128xf32>
    %cst_12 = arith.constant dense<0.000000e+00> : vector<16x128xf32>
    %14 = tpu.matmul %9, %11, %cst_12 {dimension_numbers = #tpu.dot_dimension_numbers<[1], [0], [0], [1], [0, 0, 1, 1], [], []>} : vector<16x128xf32>, vector<128x128xf32>, vector<16x128xf32> -> vector<16x128xf32>
    %15 = vector.broadcast %13 : vector<1x128xf32> to vector<16x128xf32>
    %16 = arith.addf %14, %15 : vector<16x128xf32>
    %cst_13 = arith.constant 0.000000e+00 : f32
    %17 = vector.broadcast %cst_13 : f32 to vector<16x128xf32>
    %18 = arith.maximumf %16, %17 : vector<16x128xf32>
    %c2 = arith.constant 2 : index
    %c0_14 = arith.constant 0 : index
    %c0_15 = arith.constant 0 : index
    %19 = vector.load %arg2[%c2, %c0_14, %c0_15] : memref<5x136x128xf32, #tpu.memory_space<vmem>>, vector<1x128x128xf32>
    %20 = vector.shape_cast %19 : vector<1x128x128xf32> to vector<128x128xf32>
    %c2_16 = arith.constant 2 : index
    %c128_17 = arith.constant 128 : index
    %c0_18 = arith.constant 0 : index
    %21 = vector.load %arg2[%c2_16, %c128_17, %c0_18] : memref<5x136x128xf32, #tpu.memory_space<vmem>>, vector<1x1x128xf32>
    %22 = vector.shape_cast %21 : vector<1x1x128xf32> to vector<1x128xf32>
    %cst_19 = arith.constant dense<0.000000e+00> : vector<16x128xf32>
    %23 = tpu.matmul %18, %20, %cst_19 {dimension_numbers = #tpu.dot_dimension_numbers<[1], [0], [0], [1], [0, 0, 1, 1], [], []>} : vector<16x128xf32>, vector<128x128xf32>, vector<16x128xf32> -> vector<16x128xf32>
    %24 = vector.broadcast %22 : vector<1x128xf32> to vector<16x128xf32>
    %25 = arith.addf %23, %24 : vector<16x128xf32>
    %cst_20 = arith.constant 0.000000e+00 : f32
    %26 = vector.broadcast %cst_20 : f32 to vector<16x128xf32>
    %27 = arith.maximumf %25, %26 : vector<16x128xf32>
    %c3 = arith.constant 3 : index
    %c0_21 = arith.constant 0 : index
    %c0_22 = arith.constant 0 : index
    %28 = vector.load %arg2[%c3, %c0_21, %c0_22] : memref<5x136x128xf32, #tpu.memory_space<vmem>>, vector<1x128x128xf32>
    %29 = vector.shape_cast %28 : vector<1x128x128xf32> to vector<128x128xf32>
    %c3_23 = arith.constant 3 : index
    %c128_24 = arith.constant 128 : index
    %c0_25 = arith.constant 0 : index
    %30 = vector.load %arg2[%c3_23, %c128_24, %c0_25] : memref<5x136x128xf32, #tpu.memory_space<vmem>>, vector<1x1x128xf32>
    %31 = vector.shape_cast %30 : vector<1x1x128xf32> to vector<1x128xf32>
    %cst_26 = arith.constant dense<0.000000e+00> : vector<16x128xf32>
    %32 = tpu.matmul %27, %29, %cst_26 {dimension_numbers = #tpu.dot_dimension_numbers<[1], [0], [0], [1], [0, 0, 1, 1], [], []>} : vector<16x128xf32>, vector<128x128xf32>, vector<16x128xf32> -> vector<16x128xf32>
    %33 = vector.broadcast %31 : vector<1x128xf32> to vector<16x128xf32>
    %34 = arith.addf %32, %33 : vector<16x128xf32>
    %cst_27 = arith.constant 0.000000e+00 : f32
    %35 = vector.broadcast %cst_27 : f32 to vector<16x128xf32>
    %36 = arith.maximumf %34, %35 : vector<16x128xf32>
    %c4 = arith.constant 4 : index
    %c0_28 = arith.constant 0 : index
    %c0_29 = arith.constant 0 : index
    %37 = vector.load %arg2[%c4, %c0_28, %c0_29] : memref<5x136x128xf32, #tpu.memory_space<vmem>>, vector<1x128x128xf32>
    %38 = vector.shape_cast %37 : vector<1x128x128xf32> to vector<128x128xf32>
    %c4_30 = arith.constant 4 : index
    %c128_31 = arith.constant 128 : index
    %c0_32 = arith.constant 0 : index
    %39 = vector.load %arg2[%c4_30, %c128_31, %c0_32] : memref<5x136x128xf32, #tpu.memory_space<vmem>>, vector<1x1x128xf32>
    %40 = vector.shape_cast %39 : vector<1x1x128xf32> to vector<1x128xf32>
    %cst_33 = arith.constant dense<0.000000e+00> : vector<16x128xf32>
    %41 = tpu.matmul %36, %38, %cst_33 {dimension_numbers = #tpu.dot_dimension_numbers<[1], [0], [0], [1], [0, 0, 1, 1], [], []>} : vector<16x128xf32>, vector<128x128xf32>, vector<16x128xf32> -> vector<16x128xf32>
    %42 = vector.broadcast %40 : vector<1x128xf32> to vector<16x128xf32>
    %43 = arith.addf %41, %42 : vector<16x128xf32>
    %c0_34 = arith.constant 0 : index
    %c0_35 = arith.constant 0 : index
    %44 = vector.load %arg3[%c0_34, %c0_35] : memref<16x128xf32, #tpu.memory_space<vmem>>, vector<16x128xf32>
    tpu.vector_store %arg3[%c0_34, %c0_35], %43 {strides = array<i32>} : memref<16x128xf32, #tpu.memory_space<vmem>>, vector<16x128xf32>,
    return
  }
  func.func @transform_0(%arg0: i32) -> (i32, i32) {
    %c0_i32 = arith.constant 0 : i32
    %c0_i32_0 = arith.constant 0 : i32
    return %arg0, %c0_i32 : i32, i32
  }
  func.func @transform_1(%arg0: i32) -> (i32, i32, i32) {
    %c0_i32 = arith.constant 0 : i32
    %c0_i32_0 = arith.constant 0 : i32
    %c0_i32_1 = arith.constant 0 : i32
    %c0_i32_2 = arith.constant 0 : i32
    return %c0_i32, %c0_i32_0, %c0_i32_1 : i32, i32, i32
  }
  func.func @transform_2(%arg0: i32) -> (i32, i32) {
    %c0_i32 = arith.constant 0 : i32
    %c0_i32_0 = arith.constant 0 : i32
    return %arg0, %c0_i32 : i32, i32
  }
}

</mosaic_0001>

<llo_original>
// kernel: tpu_custom_call.1
$region0: #{tpu_custom_call.1}
  #allocation0 [shape = 'u32[]', space=smem, size = 0x4, offset = 0x4, fixed_abs, tag = 'smem constant byte address 0x4 - core index']
  #allocation1 [shape = 'u32[72,128]{1,0:T(1,128)}', space=vmem, size = 0x9000, scoped, tag = 'internal scratch']
  %s0 = inlined_call_operand.vmem [shape: f32[64,8], index: 0, kind: input, shape index: {}]
  %s1 = inlined_call_operand.hbm [shape: f32[5,136,128], index: 1, kind: input, shape index: {}]
  %s2 = inlined_call_operand.hbm [shape: f32[64,128], index: 2, kind: output, shape index: {}]
  %s3 = sld [smem:[#allocation0]]
  $region45: #{tpu_custom_call.1} parent=0
    _
  %s5 = ssub.s32 1, %s3
  %s6 = scalar_select 0, %s5, %s3
  $region1: #{tpu_custom_call.1} parent=0
    #allocation2 [shape = 'u8[348160]{0}', space=vmem, size = 0x55000, scoped, tag = 'input window, operand 1, single buffered']
    #allocation3 [shape = 's32[2]{0}', space=sflag, size = 0x8, scoped, tag = 'scoped memory for tpu_custom_call.1']
    #allocation4 [shape = 's32[2]{0}', space=sflag, size = 0x8, scoped, tag = 'scoped memory for tpu_custom_call.1']
    #allocation5 [shape = 'u8[16384]{0}', space=vmem, size = 0x4000, scoped, tag = 'output window, operand 0']
    %7 = vsyncpa [#allocation3], 0
    %8 = vsyncpa [#allocation4], 0
    %s9 = scalar_lea.sflag [#allocation4], 1
    %10 = vsyncpa %s9, 0
    loop: start=0, step=1, limit=6
    $region2: #{tpu_custom_call.1} parent=1 // loop_pre_header
      _
    $region3: #{tpu_custom_call.1} parent=1 // loop_header
      %s12 = sphi 0, %s16
      %p13 = scmp.ge.s32.totalorder %s12, 6
      %s22 = sphi 0, %s24
      %s25 = sphi 0, %s22
      %s26 = sphi 0, %s25
      %s42 = sphi 0, %s26
      %s46 = sphi 0, %s46
      %s48 = sphi 0, %s46
      %s49 = sphi 0, %s48
      %s63 = sphi 0, %s49
      %s69 = sphi 0, %s71
      %s72 = sphi 0, %s69
      %s73 = sphi 0, %s72
      %s89 = sphi 0, %s73
    $region4: #{tpu_custom_call.1} parent=1 // loop_header_branch
      %15 = sbr.rel (%p13) target = $region8
    $region5: #{tpu_custom_call.1} parent=1 // loop_body
      %s17 = ssub.s32 %s12, 1
      %s18 = ssub.s32 %s12, 2
      %s19 = sadd.s32 %s12, 1
      %s20 = ssub.s32 %s12, %s19
      %p21 = scmp.eq.s32.totalorder %s20, 0
      %s23 = sadd.s32 %s22, 1
      %s24 = scalar_select %p21, %s22, %s23
      %p27 = pneg %p21
      %p28 = scmp.eq.s32.totalorder %s12, 3
      %p29 = por %p27, %p28
      %p30 = scmp.ne.s32.totalorder %s22, %s25
      %p31 = scmp.eq.s32.totalorder %s12, 0
      %p32 = por %p30, %p31
      %p33 = scmp.ne.s32.totalorder %s22, %s25
      %p34 = scmp.eq.s32.totalorder %s17, 3
      %p35 = por %p33, %p34
      %p36 = scmp.ne.s32.totalorder %s25, %s26
      %p37 = scmp.eq.s32.totalorder %s17, 0
      %p38 = por %p36, %p37
      %p39 = scmp.ne.s32.totalorder %s25, %s26
      %p40 = scmp.eq.s32.totalorder %s18, 3
      %p41 = por %p39, %p40
      %p43 = scmp.ne.s32.totalorder %s26, %s42
      %p44 = scmp.eq.s32.totalorder %s18, 0
      %p45 = por %p43, %p44
      %s47 = sadd.s32 %s46, 1
      %p50 = scmp.eq.s32.totalorder %s12, 3
      %p51 = scmp.ne.s32.totalorder %s46, %s48
      %p52 = scmp.eq.s32.totalorder %s12, 0
      %p53 = por %p51, %p52
      %p54 = scmp.ne.s32.totalorder %s46, %s48
      %p55 = scmp.eq.s32.totalorder %s17, 3
      %p56 = por %p54, %p55
      %p57 = scmp.ne.s32.totalorder %s48, %s49
      %p58 = scmp.eq.s32.totalorder %s17, 0
      %p59 = por %p57, %p58
      %p60 = scmp.ne.s32.totalorder %s48, %s49
      %p61 = scmp.eq.s32.totalorder %s18, 3
      %p62 = por %p60, %p61
      %p64 = scmp.ne.s32.totalorder %s49, %s63
      %p65 = scmp.eq.s32.totalorder %s18, 0
      %p66 = por %p64, %p65
      %s67 = ssub.s32 %s12, %s19
      %p68 = scmp.eq.s32.totalorder %s67, 0
      %s70 = sadd.s32 %s69, 1
      %s71 = scalar_select %p68, %s69, %s70
      %p74 = pneg %p68
      %p75 = scmp.eq.s32.totalorder %s12, 3
      %p76 = por %p74, %p75
      %p77 = scmp.ne.s32.totalorder %s69, %s72
      %p78 = scmp.eq.s32.totalorder %s12, 0
      %p79 = por %p77, %p78
      %p80 = scmp.ne.s32.totalorder %s69, %s72
      %p81 = scmp.eq.s32.totalorder %s17, 3
      %p82 = por %p80, %p81
      %p83 = scmp.ne.s32.totalorder %s72, %s73
      %p84 = scmp.eq.s32.totalorder %s17, 0
      %p85 = por %p83, %p84
      %p86 = scmp.ne.s32.totalorder %s72, %s73
      %p87 = scmp.eq.s32.totalorder %s18, 3
      %p88 = por %p86, %p87
      %p90 = scmp.ne.s32.totalorder %s73, %s89
      %p91 = scmp.eq.s32.totalorder %s18, 0
      %p92 = por %p90, %p91
      %p93 = scmp.le.s32.totalorder 1, %s12
      %p94 = scmp.lt.s32.totalorder %s12, 5
      %p95 = pnand %p93, %p94
      %p96 = pneg %p95
      // Predicated region
      $region9: #{tpu_custom_call.1} parent=5 // pred_check
        _
      $region10: #{tpu_custom_call.1} parent=5 // pred_check_branch
        %98 = sbr.rel (%p95) target = $region12
      $region11: #{tpu_custom_call.1} parent=5 // pred_region
        %s99 = ssub.s32 %s12, 1
        // Predicated region
        $region13: #{tpu_custom_call.1} parent=11 // pred_check
          %p100 = pneg %p59
        $region14: #{tpu_custom_call.1} parent=11 // pred_check_branch
          %102 = sbr.rel (%p100) target = $region16
        $region15: #{tpu_custom_call.1} parent=11 // pred_region
          %104 = vsyncadd [#allocation3], 0
          %s105 = sshll.u32 %s1, 4
          %s106 = int_to_ptr.hbm [resolvable:$true] %s105
          %s107 = sshll.u32 [#allocation2], 4
          %s108 = int_to_ptr.vmem [resolvable:$true] %s107
          %113 = dma.hbm_to_vmem [thread:$0]  %s106, 10880, %s108, [#allocation3], 128, 128, 8
        $region16: #{tpu_custom_call.1} parent=11 // pred_fallthru
          _
      $region12: #{tpu_custom_call.1} parent=5 // pred_fallthru
        _
      %p114 = scmp.lt.s32.totalorder %s12, 4
      // Predicated region
      $region17: #{tpu_custom_call.1} parent=5 // pred_check
        %p115 = pneg %p114
      $region18: #{tpu_custom_call.1} parent=5 // pred_check_branch
        %117 = sbr.rel (%p115) target = $region20
      $region19: #{tpu_custom_call.1} parent=5 // pred_region
        // Predicated region
        $region21: #{tpu_custom_call.1} parent=19 // pred_check
          %p118 = pneg %p32
        $region22: #{tpu_custom_call.1} parent=19 // pred_check_branch
          %120 = sbr.rel (%p118) target = $region24
        $region23: #{tpu_custom_call.1} parent=19 // pred_region
          %s121 = smul.u32 2, %s12
          %p122 = scmp.lt.s32.totalorder %s121, 7
          %s123 = scalar_select %p122, %s121, 7
          %s124 = smul.addr %s123, 8
          %s125 = scalar_lea.vmem %s0, %s124
          %s126 = smul.u32 2, %s12
        $region24: #{tpu_custom_call.1} parent=19 // pred_fallthru
          _
      $region20: #{tpu_custom_call.1} parent=5 // pred_fallthru
        _
      %p127 = scmp.le.s32.totalorder 1, %s12
      %p128 = scmp.lt.s32.totalorder %s12, 5
      %p129 = pnand %p127, %p128
      %p130 = pneg %p129
      // Predicated region
      $region25: #{tpu_custom_call.1} parent=5 // pred_check
        _
      $region26: #{tpu_custom_call.1} parent=5 // pred_check_branch
        %132 = sbr.rel (%p129) target = $region28
      $region27: #{tpu_custom_call.1} parent=5 // pred_region
        %s133 = ssub.s32 %s12, 1
        // Predicated region
        $region29: #{tpu_custom_call.1} parent=27 // pred_check
          %p134 = pneg %p59
        $region30: #{tpu_custom_call.1} parent=27 // pred_check_branch
          %136 = sbr.rel (%p134) target = $region32
        $region31: #{tpu_custom_call.1} parent=27 // pred_region
          %138 = dma.done [#allocation3], 10880
        $region32: #{tpu_custom_call.1} parent=27 // pred_fallthru
          _
        %s139 = smul.u32 2, %s17
        %p140 = scmp.lt.s32.totalorder %s139, 7
        %s141 = scalar_select %p140, %s139, 7
        %s142 = smul.addr %s141, 8
        %s143 = scalar_lea.vmem %s0, %s142
        %p144 = pneg %p38
        %p145 = pneg %p35
        %p146 = pneg %p59
        %p147 = pneg %p56
        %p148 = pneg %p85
        %p149 = pneg %p82
        %s150 = sand.u32 %s72, 1
        %s151 = scalar_lea.sflag [#allocation4], %s150
        %s152 = sand.u32 %s72, 1
        %s153 = smul.addr %s152, 16
        %s154 = scalar_lea.vmem [#allocation5], %s153
        %s155 = smul.u32 2, %s17
        %p156 = scmp.lt.s32.totalorder %s155, 7
        %s157 = scalar_select %p156, %s155, 7
        %s158 = smul.addr %s157, 8
        %s159 = scalar_lea.vmem %s0, %s158
        %s160 = smul.u32 2, %s17
        %s161 = smul.u32 2, %s17
        %v162 = vld [vmem:[%s159] sm:$0xff]
        %v163 = vld [vmem:[%s159 + $0x8] sm:$0xff]
        %v164 = vld [vmem:[#allocation2] sm:$0xff]
        %v165 = vld [vmem:[#allocation2 + $0x80] sm:$0x1]
        %v166 = vperm.slane %v165, 0
        %vm167 = vcmask 64512
        %v169 = vsel %vm167, %v162, 0
        %v172 = vsel %vm167, %v163, 0
        %174 = vmatpush.msra.mxu0 0.0
        %175 = vmatpush.msra.mxu0 0.0
        %176 = vmatpush.msra.mxu0 0.0
        %177 = vmatpush.msra.mxu0 0.0
        %178 = vmatpush.msra.mxu0 0.0
        %179 = vmatpush.msra.mxu0 0.0
        %180 = vmatpush.msra.mxu0 0.0
        %181 = vmatpush.msra.mxu0 0.0
        %182 = vmatpush.msra.mxu0 0.0
        %183 = vmatpush.msra.mxu0 0.0
        %184 = vmatpush.msra.mxu0 0.0
        %185 = vmatpush.msra.mxu0 0.0
        %186 = vmatpush.msra.mxu0 0.0
        %187 = vmatpush.msra.mxu0 0.0
        %188 = vmatpush.msra.mxu0 0.0
        %189 = vmatpush.msra.mxu0 %v164
        %190 = vmatmul.f32.gmra.mxu0 %v169
        %v191 = vpop.f32.mrf.mxu0
        %v192 = vadd.f32 %v166, %v191
        %193 = vmatmul.f32.gmra.mxu0 %v172
        %v194 = vpop.f32.mrf.mxu0
        %v195 = vadd.f32 %v166, %v194
        %196 = vdwg.mxu0
        %v197 = vmax.f32 %v192, 0.0
        %v198 = vmax.f32 %v195, 0.0
        %s199 = scalar_lea.vmem [#allocation2], 136
        %v200 = vld [vmem:[%s199] sm:$0xff]
        %v201 = vld [vmem:[%s199 + $0x8] sm:$0xff]
        %v202 = vld [vmem:[%s199 + $0x10] sm:$0xff]
        %v203 = vld [vmem:[%s199 + $0x18] sm:$0xff]
        %v204 = vld [vmem:[%s199 + $0x20] sm:$0xff]
        %v205 = vld [vmem:[%s199 + $0x28] sm:$0xff]
        %v206 = vld [vmem:[%s199 + $0x30] sm:$0xff]
        %v207 = vld [vmem:[%s199 + $0x38] sm:$0xff]
        %v208 = vld [vmem:[%s199 + $0x40] sm:$0xff]
        %v209 = vld [vmem:[%s199 + $0x48] sm:$0xff]
        %v210 = vld [vmem:[%s199 + $0x50] sm:$0xff]
        %v211 = vld [vmem:[%s199 + $0x58] sm:$0xff]
        %v212 = vld [vmem:[%s199 + $0x60] sm:$0xff]
        %v213 = vld [vmem:[%s199 + $0x68] sm:$0xff]
        %v214 = vld [vmem:[%s199 + $0x70] sm:$0xff]
        %v215 = vld [vmem:[%s199 + $0x78] sm:$0xff]
        %v216 = vld [vmem:[%s199 + $0x80] sm:$0x1]
        %v217 = vperm.slane %v216, 0
        %218 = vmatpush.msra.mxu0 %v215
        %219 = vmatpush.msra.mxu0 %v214
        %220 = vmatpush.msra.mxu0 %v213
        %221 = vmatpush.msra.mxu0 %v212
        %222 = vmatpush.msra.mxu0 %v211
        %223 = vmatpush.msra.mxu0 %v210
        %224 = vmatpush.msra.mxu0 %v209
        %225 = vmatpush.msra.mxu0 %v208
        %226 = vmatpush.msra.mxu0 %v207
        %227 = vmatpush.msra.mxu0 %v206
        %228 = vmatpush.msra.mxu0 %v205
        %229 = vmatpush.msra.mxu0 %v204
        %230 = vmatpush.msra.mxu0 %v203
        %231 = vmatpush.msra.mxu0 %v202
        %232 = vmatpush.msra.mxu0 %v201
        %233 = vmatpush.msra.mxu0 %v200
        %234 = vmatmul.f32.gmra.mxu0 %v197
        %v235 = vpop.f32.mrf.mxu0
        %v236 = vadd.f32 %v217, %v235
        %237 = vmatmul.f32.gmra.mxu0 %v198
        %v238 = vpop.f32.mrf.mxu0
        %v239 = vadd.f32 %v217, %v238
        %240 = vdwg.mxu0
        %v241 = vmax.f32 %v236, 0.0
        %v242 = vmax.f32 %v239, 0.0
        %s243 = scalar_lea.vmem [#allocation2], 272
        %v244 = vld [vmem:[%s243] sm:$0xff]
        %v245 = vld [vmem:[%s243 + $0x8] sm:$0xff]
        %v246 = vld [vmem:[%s243 + $0x10] sm:$0xff]
        %v247 = vld [vmem:[%s243 + $0x18] sm:$0xff]
        %v248 = vld [vmem:[%s243 + $0x20] sm:$0xff]
        %v249 = vld [vmem:[%s243 + $0x28] sm:$0xff]
        %v250 = vld [vmem:[%s243 + $0x30] sm:$0xff]
        %v251 = vld [vmem:[%s243 + $0x38] sm:$0xff]
        %v252 = vld [vmem:[%s243 + $0x40] sm:$0xff]
        %v253 = vld [vmem:[%s243 + $0x48] sm:$0xff]
        %v254 = vld [vmem:[%s243 + $0x50] sm:$0xff]
        %v255 = vld [vmem:[%s243 + $0x58] sm:$0xff]
        %v256 = vld [vmem:[%s243 + $0x60] sm:$0xff]
        %v257 = vld [vmem:[%s243 + $0x68] sm:$0xff]
        %v258 = vld [vmem:[%s243 + $0x70] sm:$0xff]
        %v259 = vld [vmem:[%s243 + $0x78] sm:$0xff]
        %v260 = vld [vmem:[%s243 + $0x80] sm:$0x1]
        %v261 = vperm.slane %v260, 0
        %262 = vmatpush.msra.mxu0 %v259
        %263 = vmatpush.msra.mxu0 %v258
        %264 = vmatpush.msra.mxu0 %v257
        %265 = vmatpush.msra.mxu0 %v256
        %266 = vmatpush.msra.mxu0 %v255
        %267 = vmatpush.msra.mxu0 %v254
        %268 = vmatpush.msra.mxu0 %v253
        %269 = vmatpush.msra.mxu0 %v252
        %270 = vmatpush.msra.mxu0 %v251
        %271 = vmatpush.msra.mxu0 %v250
        %272 = vmatpush.msra.mxu0 %v249
        %273 = vmatpush.msra.mxu0 %v248
        %274 = vmatpush.msra.mxu0 %v247
        %275 = vmatpush.msra.mxu0 %v246
        %276 = vmatpush.msra.mxu0 %v245
        %277 = vmatpush.msra.mxu0 %v244
        %278 = vmatmul.f32.gmra.mxu0 %v241
        %v279 = vpop.f32.mrf.mxu0
        %v280 = vadd.f32 %v261, %v279
        %281 = vmatmul.f32.gmra.mxu0 %v242
        %v282 = vpop.f32.mrf.mxu0
        %v283 = vadd.f32 %v261, %v282
        %284 = vdwg.mxu0
        %v285 = vmax.f32 %v280, 0.0
        %v286 = vmax.f32 %v283, 0.0
        %s287 = scalar_lea.vmem [#allocation2], 408
        %v288 = vld [vmem:[%s287] sm:$0xff]
        %v289 = vld [vmem:[%s287 + $0x8] sm:$0xff]
        %v290 = vld [vmem:[%s287 + $0x10] sm:$0xff]
        %v291 = vld [vmem:[%s287 + $0x18] sm:$0xff]
        %v292 = vld [vmem:[%s287 + $0x20] sm:$0xff]
        %v293 = vld [vmem:[%s287 + $0x28] sm:$0xff]
        %v294 = vld [vmem:[%s287 + $0x30] sm:$0xff]
        %v295 = vld [vmem:[%s287 + $0x38] sm:$0xff]
        %v296 = vld [vmem:[%s287 + $0x40] sm:$0xff]
        %v297 = vld [vmem:[%s287 + $0x48] sm:$0xff]
        %v298 = vld [vmem:[%s287 + $0x50] sm:$0xff]
        %v299 = vld [vmem:[%s287 + $0x58] sm:$0xff]
        %v300 = vld [vmem:[%s287 + $0x60] sm:$0xff]
        %v301 = vld [vmem:[%s287 + $0x68] sm:$0xff]
        %v302 = vld [vmem:[%s287 + $0x70] sm:$0xff]
        %v303 = vld [vmem:[%s287 + $0x78] sm:$0xff]
        %v304 = vld [vmem:[%s287 + $0x80] sm:$0x1]
        %v305 = vperm.slane %v304, 0
        %306 = vmatpush.msra.mxu0 %v303
        %307 = vmatpush.msra.mxu0 %v302
        %308 = vmatpush.msra.mxu0 %v301
        %309 = vmatpush.msra.mxu0 %v300
        %310 = vmatpush.msra.mxu0 %v299
        %311 = vmatpush.msra.mxu0 %v298
        %312 = vmatpush.msra.mxu0 %v297
        %313 = vmatpush.msra.mxu0 %v296
        %314 = vmatpush.msra.mxu0 %v295
        %315 = vmatpush.msra.mxu0 %v294
        %316 = vmatpush.msra.mxu0 %v293
        %317 = vmatpush.msra.mxu0 %v292
        %318 = vmatpush.msra.mxu0 %v291
        %319 = vmatpush.msra.mxu0 %v290
        %320 = vmatpush.msra.mxu0 %v289
        %321 = vmatpush.msra.mxu0 %v288
        %322 = vmatmul.f32.gmra.mxu0 %v285
        %v323 = vpop.f32.mrf.mxu0
        %v324 = vadd.f32 %v305, %v323
        %325 = vmatmul.f32.gmra.mxu0 %v286
        %v326 = vpop.f32.mrf.mxu0
        %v327 = vadd.f32 %v305, %v326
        %328 = vdwg.mxu0
        %v329 = vmax.f32 %v324, 0.0
        %v330 = vmax.f32 %v327, 0.0
        %s331 = scalar_lea.vmem [#allocation2], 544
        %v332 = vld [vmem:[%s331] sm:$0xff]
        %v333 = vld [vmem:[%s331 + $0x8] sm:$0xff]
        %v334 = vld [vmem:[%s331 + $0x10] sm:$0xff]
        %v335 = vld [vmem:[%s331 + $0x18] sm:$0xff]
        %v336 = vld [vmem:[%s331 + $0x20] sm:$0xff]
        %v337 = vld [vmem:[%s331 + $0x28] sm:$0xff]
        %v338 = vld [vmem:[%s331 + $0x30] sm:$0xff]
        %v339 = vld [vmem:[%s331 + $0x38] sm:$0xff]
        %v340 = vld [vmem:[%s331 + $0x40] sm:$0xff]
        %v341 = vld [vmem:[%s331 + $0x48] sm:$0xff]
        %v342 = vld [vmem:[%s331 + $0x50] sm:$0xff]
        %v343 = vld [vmem:[%s331 + $0x58] sm:$0xff]
        %v344 = vld [vmem:[%s331 + $0x60] sm:$0xff]
        %v345 = vld [vmem:[%s331 + $0x68] sm:$0xff]
        %v346 = vld [vmem:[%s331 + $0x70] sm:$0xff]
        %v347 = vld [vmem:[%s331 + $0x78] sm:$0xff]
        %v348 = vld [vmem:[%s331 + $0x80] sm:$0x1]
        %v349 = vperm.slane %v348, 0
        %350 = vmatpush.msra.mxu0 %v347
        %351 = vmatpush.msra.mxu0 %v346
        %352 = vmatpush.msra.mxu0 %v345
        %353 = vmatpush.msra.mxu0 %v344
        %354 = vmatpush.msra.mxu0 %v343
        %355 = vmatpush.msra.mxu0 %v342
        %356 = vmatpush.msra.mxu0 %v341
        %357 = vmatpush.msra.mxu0 %v340
        %358 = vmatpush.msra.mxu0 %v339
        %359 = vmatpush.msra.mxu0 %v338
        %360 = vmatpush.msra.mxu0 %v337
        %361 = vmatpush.msra.mxu0 %v336
        %362 = vmatpush.msra.mxu0 %v335
        %363 = vmatpush.msra.mxu0 %v334
        %364 = vmatpush.msra.mxu0 %v333
        %365 = vmatpush.msra.mxu0 %v332
        %366 = vmatmul.f32.gmra.mxu0 %v329
        %v367 = vpop.f32.mrf.mxu0
        %v368 = vadd.f32 %v349, %v367
        %369 = vmatmul.f32.gmra.mxu0 %v330
        %v370 = vpop.f32.mrf.mxu0
        %v371 = vadd.f32 %v349, %v370
        %372 = vdwg.mxu0
        %373 = vst [vmem:[%s154] sm:$0xff] %v368
        %374 = vst [vmem:[%s154 + $0x8] sm:$0xff] %v371
        %s375 = sand.u32 %s72, 1
        %s376 = scalar_lea.sflag [#allocation4], %s375
        %s377 = sand.u32 %s72, 1
        %s378 = smul.addr %s377, 16
        %s379 = scalar_lea.vmem [#allocation5], %s378
        // Predicated region
        $region33: #{tpu_custom_call.1} parent=27 // pred_check
          %p380 = pneg %p82
        $region34: #{tpu_custom_call.1} parent=27 // pred_check_branch
          %382 = sbr.rel (%p380) target = $region36
        $region35: #{tpu_custom_call.1} parent=27 // pred_region
          %s383 = smul.u32 2, %s17
          %385 = vsyncadd %s376, 0
          %s386 = smul.addr %s383, 8
          %s387 = scalar_lea.hbm %s2, %s386
          %s388 = sshll.u32 %s379, 4
          %s389 = int_to_ptr.vmem [resolvable:$true] %s388
          %s390 = sshll.u32 %s387, 4
          %s391 = int_to_ptr.hbm [resolvable:$true] %s390
          %396 = dma.vmem_to_hbm [thread:$0]  %s389, 256, %s391, %s376, 128, 128, 8
        $region36: #{tpu_custom_call.1} parent=27 // pred_fallthru
          _
      $region28: #{tpu_custom_call.1} parent=5 // pred_fallthru
        _
      %p397 = scmp.le.s32.totalorder 2, %s12
      // Predicated region
      $region37: #{tpu_custom_call.1} parent=5 // pred_check
        %p398 = pneg %p397
      $region38: #{tpu_custom_call.1} parent=5 // pred_check_branch
        %400 = sbr.rel (%p398) target = $region40
      $region39: #{tpu_custom_call.1} parent=5 // pred_region
        %s401 = ssub.s32 %s12, 2
        // Predicated region
        $region41: #{tpu_custom_call.1} parent=39 // pred_check
          %p402 = pneg %p88
        $region42: #{tpu_custom_call.1} parent=39 // pred_check_branch
          %404 = sbr.rel (%p402) target = $region44
        $region43: #{tpu_custom_call.1} parent=39 // pred_region
          %s405 = sand.u32 %s73, 1
          %s406 = scalar_lea.sflag [#allocation4], %s405
          %s407 = sand.u32 %s73, 1
          %s408 = smul.addr %s407, 16
          %s409 = scalar_lea.vmem [#allocation5], %s408
          %411 = dma.done %s406, 256
        $region44: #{tpu_custom_call.1} parent=39 // pred_fallthru
          _
      $region40: #{tpu_custom_call.1} parent=5 // pred_fallthru
        _
    $region6: #{tpu_custom_call.1} parent=1 // loop_footer
      %s16 = sadd.s32 1, %s12
    $region7: #{tpu_custom_call.1} parent=1 // loop_footer_branch
      %11 = sbr.rel target = $region3
    $region8: #{tpu_custom_call.1} parent=1 // loop_exit
      _
    %412 = vsyncpa [#allocation3], 1
    %s413 = scalar_lea.sflag [#allocation3], 1
    %414 = vsyncpa %s413, 1
    %415 = vsyncpa [#allocation4], 1
    %s416 = scalar_lea.sflag [#allocation4], 1
    %417 = vsyncpa %s416, 1

</llo_original>
